<compile_context>
chip_gen: v7x
topology: tpu7x:2x2x1
jax: 0.10.0
libtpu: 0.0.40
codegen_flags: <defaults>
</compile_context>

<pallas_src>
import jax
import jax.numpy as jnp
from jax import lax
from jax.experimental import pallas as pl
from jax.experimental.pallas import tpu as pltpu


def make_sepconv1d_kernel(n_layers, kernel_size, eps):
    K = kernel_size
    P = K // 2

    def kernel(x_ref, w_ref, b_ref, o_ref):
        # x_ref: (R, T)            rows = flattened (batch, channel), T = time (lanes)
        # w_ref: (L, R, K)         per-row depthwise taps (channel weights tiled over batch)
        # b_ref: (L, R, 1)         per-row bias
        y = x_ref[...]
        R, T = y.shape
        zpad = jnp.zeros((R, P), jnp.float32) if P > 0 else None

        for l in range(n_layers):
            # --- InstanceNorm1d (affine=False, biased variance, eps) ---
            mean = jnp.mean(y, axis=-1, keepdims=True)
            centered = y - mean
            var = jnp.mean(centered * centered, axis=-1, keepdims=True)
            y = centered * lax.rsqrt(var + eps)          # rsqrt -> EUP slot

            # --- depthwise Conv1d (groups=C), padding = K // 2 ---
            if P > 0:
                padded = jnp.concatenate([zpad, y, zpad], axis=-1)  # (R, T + 2P)
            else:
                padded = y
            wl = w_ref[l]                                # (R, K)
            acc = b_ref[l]                               # (R, 1) -> broadcasts to (R, T)
            for k in range(K):
                acc = acc + wl[:, k:k + 1] * padded[:, k:k + T]

            # --- ReLU ---
            y = jnp.maximum(acc, 0.0)

        o_ref[...] = y

    return kernel


def sepconv1d_forward(x, weights, biases, *, kernel_size, eps=1e-5, row_tile=None):
    """Pallas forward for SepConv1dModule.

    x: (B, C, T) float, or (B, C, T, 1) (squeezed like the PyTorch module).
    weights: list of n_layers arrays (C, K)  (PyTorch Conv1d weight[:, 0, :]).
    biases:  list of n_layers arrays (C,).
    Returns (B, C, T) float32.
    """
    if x.ndim == 4:
        assert x.shape[-1] == 1, f"unsupported input channel {x.shape[-1]}"
        x = x[..., 0]
    B, C, T = x.shape
    n_layers = len(weights)
    K = kernel_size
    R = B * C

    x_flat = x.reshape(R, T).astype(jnp.float32)
    # Pack all layer parameters into two slabs; tile channel params across batch rows
    # so row b*C + c of the slab matches row b*C + c of x_flat.
    w_packed = jnp.stack(
        [jnp.tile(jnp.asarray(w, jnp.float32), (B, 1)) for w in weights])                  # (L, R, K)
    b_packed = jnp.stack(
        [jnp.tile(jnp.asarray(b, jnp.float32).reshape(C, 1), (B, 1)) for b in biases])     # (L, R, 1)

    if row_tile is None:
        row_tile = R                      # single program: whole problem resident in VMEM
    assert R % row_tile == 0 and (row_tile == R or row_tile % 8 == 0), \
        "row_tile must divide B*C and be a multiple of 8 (or the full row count)"
    grid = (R // row_tile,)

    kernel = make_sepconv1d_kernel(n_layers, K, eps)
    out = pl.pallas_call(
        kernel,
        out_shape=jax.ShapeDtypeStruct((R, T), jnp.float32),
        grid=grid,
        in_specs=[
            pl.BlockSpec((row_tile, T), lambda i: (i, 0)),
            pl.BlockSpec((n_layers, row_tile, K), lambda i: (0, i, 0)),
            pl.BlockSpec((n_layers, row_tile, 1), lambda i: (0, i, 0)),
        ],
        out_specs=pl.BlockSpec((row_tile, T), lambda i: (i, 0)),
        compiler_params=pltpu.CompilerParams(dimension_semantics=("parallel",)),
    )(x_flat, w_packed, b_packed)
    return out.reshape(B, C, T)


def sepconv1d_reference(x, weights, biases, *, kernel_size, eps=1e-5):
    """Pure-JAX reference mirroring the PyTorch forward (InstanceNorm1d -> depthwise Conv1d -> ReLU)."""
    if x.ndim == 4:
        assert x.shape[-1] == 1
        x = x[..., 0]
    K = kernel_size
    P = K // 2
    y = x.astype(jnp.float32)
    B, C, T = y.shape
    for w, b in zip(weights, biases):
        mean = jnp.mean(y, axis=-1, keepdims=True)
        var = jnp.mean((y - mean) ** 2, axis=-1, keepdims=True)   # biased, like InstanceNorm
        y = (y - mean) / jnp.sqrt(var + eps)
        yp = jnp.pad(y, ((0, 0), (0, 0), (P, P)))
        acc = b[None, :, None]
        for k in range(K):
            acc = acc + w[:, k][None, :, None] * yp[:, :, k:k + T]
        y = jnp.maximum(acc, 0.0)
    return y


if __name__ == "__main__":
    # Small shapes consistent with the module: x is (B, F, T)
    B, C, T = 2, 16, 128
    kernel_size, n_layers = 3, 2

    key = jax.random.PRNGKey(0)
    keys = jax.random.split(key, 1 + 2 * n_layers)
    kx, kparams = keys[0], keys[1:]

    bound = 1.0 / (kernel_size ** 0.5)   # PyTorch Conv1d init bound (fan_in = K for depthwise)
    weights = [jax.random.uniform(kparams[2 * l], (C, kernel_size), jnp.float32, -bound, bound)
               for l in range(n_layers)]
    biases = [jax.random.uniform(kparams[2 * l + 1], (C,), jnp.float32, -bound, bound)
              for l in range(n_layers)]
    x = jax.random.normal(kx, (B, C, T), jnp.float32)

    out = sepconv1d_forward(x, weights, biases, kernel_size=kernel_size)
    jax.block_until_ready(out)

    ref = sepconv1d_reference(x, weights, biases, kernel_size=kernel_size)
    assert out.shape == (B, C, T)
    assert jnp.allclose(out, ref, atol=1e-5, rtol=1e-4), \
        f"max abs err {float(jnp.max(jnp.abs(out - ref)))}"
    print("KERNEL_OK")
</pallas_src>

<mosaic_0001>
module attributes {stable_mosaic.version = 11 : i64} {
  func.func @kernel(%arg0: i32, %arg1: memref<32x128xf32, #tpu.memory_space<vmem>>, %arg2: memref<2x32x3xf32, #tpu.memory_space<vmem>>, %arg3: memref<2x32x1xf32, #tpu.memory_space<vmem>>, %arg4: memref<32x128xf32, #tpu.memory_space<vmem>>) attributes {dimension_semantics = [#tpu.dimension_semantics<parallel>], iteration_bounds = array<i64: 1>, scalar_prefetch = 0 : i64, scratch_operands = 0 : i64, tpu.core_type = #tpu.core_type<tc>, window_params = [{transform_indices = @transform_0, window_bounds = array<i64: 32, 128>}, {transform_indices = @transform_1, window_bounds = array<i64: 2, 32, 3>}, {transform_indices = @transform_2, window_bounds = array<i64: 2, 32, 1>}, {transform_indices = @transform_3, window_bounds = array<i64: 32, 128>}]} {
    %c0 = arith.constant 0 : index
    %c0_0 = arith.constant 0 : index
    %0 = vector.load %arg1[%c0, %c0_0] : memref<32x128xf32, #tpu.memory_space<vmem>>, vector<32x128xf32>
    %cst = arith.constant 0.000000e+00 : f32
    %1 = vector.broadcast %cst : f32 to vector<32x1xf32>
    %cst_1 = arith.constant dense<0.000000e+00> : vector<32xf32>
    %2 = vector.multi_reduction <add>, %0, %cst_1 [1] : vector<32x128xf32> to vector<32xf32>
    %3 = vector.shape_cast %2 : vector<32xf32> to vector<32x1xf32>
    %cst_2 = arith.constant 1.280000e+02 : f32
    %4 = vector.broadcast %cst_2 : f32 to vector<32x1xf32>
    %5 = arith.divf %3, %4 : vector<32x1xf32>
    %6 = vector.broadcast %5 : vector<32x1xf32> to vector<32x128xf32>
    %7 = arith.subf %0, %6 : vector<32x128xf32>
    %8 = arith.mulf %7, %7 : vector<32x128xf32>
    %cst_3 = arith.constant dense<0.000000e+00> : vector<32xf32>
    %9 = vector.multi_reduction <add>, %8, %cst_3 [1] : vector<32x128xf32> to vector<32xf32>
    %10 = vector.shape_cast %9 : vector<32xf32> to vector<32x1xf32>
    %cst_4 = arith.constant 1.280000e+02 : f32
    %11 = vector.broadcast %cst_4 : f32 to vector<32x1xf32>
    %12 = arith.divf %10, %11 : vector<32x1xf32>
    %cst_5 = arith.constant 9.99999974E-6 : f32
    %13 = vector.broadcast %cst_5 : f32 to vector<32x1xf32>
    %14 = arith.addf %12, %13 : vector<32x1xf32>
    %15 = math.rsqrt %14 : vector<32x1xf32>
    %16 = vector.broadcast %15 : vector<32x1xf32> to vector<32x128xf32>
    %17 = arith.mulf %7, %16 : vector<32x128xf32>
    %18 = tpu.concatenate %1, %17, %1 in 1 : vector<32x1xf32>, vector<32x128xf32>, vector<32x1xf32> -> vector<32x130xf32>
    %c0_6 = arith.constant 0 : index
    %c0_7 = arith.constant 0 : index
    %c0_8 = arith.constant 0 : index
    %19 = vector.load %arg2[%c0_6, %c0_7, %c0_8] : memref<2x32x3xf32, #tpu.memory_space<vmem>>, vector<1x32x3xf32>
    %20 = vector.shape_cast %19 : vector<1x32x3xf32> to vector<32x3xf32>
    %c0_9 = arith.constant 0 : index
    %c0_10 = arith.constant 0 : index
    %c0_11 = arith.constant 0 : index
    %21 = vector.load %arg3[%c0_9, %c0_10, %c0_11] : memref<2x32x1xf32, #tpu.memory_space<vmem>>, vector<1x32x1xf32>
    %22 = vector.shape_cast %21 : vector<1x32x1xf32> to vector<32x1xf32>
    %23 = vector.extract_strided_slice %20 {offsets = [0, 0], sizes = [32, 1], strides = [1, 1]} : vector<32x3xf32> to vector<32x1xf32>
    %24 = vector.extract_strided_slice %18 {offsets = [0, 0], sizes = [32, 128], strides = [1, 1]} : vector<32x130xf32> to vector<32x128xf32>
    %25 = vector.broadcast %23 : vector<32x1xf32> to vector<32x128xf32>
    %26 = arith.mulf %25, %24 : vector<32x128xf32>
    %27 = vector.broadcast %22 : vector<32x1xf32> to vector<32x128xf32>
    %28 = arith.addf %27, %26 : vector<32x128xf32>
    %29 = vector.extract_strided_slice %20 {offsets = [0, 1], sizes = [32, 1], strides = [1, 1]} : vector<32x3xf32> to vector<32x1xf32>
    %30 = vector.extract_strided_slice %18 {offsets = [0, 1], sizes = [32, 128], strides = [1, 1]} : vector<32x130xf32> to vector<32x128xf32>
    %31 = vector.broadcast %29 : vector<32x1xf32> to vector<32x128xf32>
    %32 = arith.mulf %31, %30 : vector<32x128xf32>
    %33 = arith.addf %28, %32 : vector<32x128xf32>
    %34 = vector.extract_strided_slice %20 {offsets = [0, 2], sizes = [32, 1], strides = [1, 1]} : vector<32x3xf32> to vector<32x1xf32>
    %35 = vector.extract_strided_slice %18 {offsets = [0, 2], sizes = [32, 128], strides = [1, 1]} : vector<32x130xf32> to vector<32x128xf32>
    %36 = vector.broadcast %34 : vector<32x1xf32> to vector<32x128xf32>
    %37 = arith.mulf %36, %35 : vector<32x128xf32>
    %38 = arith.addf %33, %37 : vector<32x128xf32>
    %cst_12 = arith.constant 0.000000e+00 : f32
    %39 = vector.broadcast %cst_12 : f32 to vector<32x128xf32>
    %40 = arith.maximumf %38, %39 : vector<32x128xf32>
    %cst_13 = arith.constant dense<0.000000e+00> : vector<32xf32>
    %41 = vector.multi_reduction <add>, %40, %cst_13 [1] : vector<32x128xf32> to vector<32xf32>
    %42 = vector.shape_cast %41 : vector<32xf32> to vector<32x1xf32>
    %cst_14 = arith.constant 1.280000e+02 : f32
    %43 = vector.broadcast %cst_14 : f32 to vector<32x1xf32>
    %44 = arith.divf %42, %43 : vector<32x1xf32>
    %45 = vector.broadcast %44 : vector<32x1xf32> to vector<32x128xf32>
    %46 = arith.subf %40, %45 : vector<32x128xf32>
    %47 = arith.mulf %46, %46 : vector<32x128xf32>
    %cst_15 = arith.constant dense<0.000000e+00> : vector<32xf32>
    %48 = vector.multi_reduction <add>, %47, %cst_15 [1] : vector<32x128xf32> to vector<32xf32>
    %49 = vector.shape_cast %48 : vector<32xf32> to vector<32x1xf32>
    %cst_16 = arith.constant 1.280000e+02 : f32
    %50 = vector.broadcast %cst_16 : f32 to vector<32x1xf32>
    %51 = arith.divf %49, %50 : vector<32x1xf32>
    %cst_17 = arith.constant 9.99999974E-6 : f32
    %52 = vector.broadcast %cst_17 : f32 to vector<32x1xf32>
    %53 = arith.addf %51, %52 : vector<32x1xf32>
    %54 = math.rsqrt %53 : vector<32x1xf32>
    %55 = vector.broadcast %54 : vector<32x1xf32> to vector<32x128xf32>
    %56 = arith.mulf %46, %55 : vector<32x128xf32>
    %57 = tpu.concatenate %1, %56, %1 in 1 : vector<32x1xf32>, vector<32x128xf32>, vector<32x1xf32> -> vector<32x130xf32>
    %c1 = arith.constant 1 : index
    %c0_18 = arith.constant 0 : index
    %c0_19 = arith.constant 0 : index
    %58 = vector.load %arg2[%c1, %c0_18, %c0_19] : memref<2x32x3xf32, #tpu.memory_space<vmem>>, vector<1x32x3xf32>
    %59 = vector.shape_cast %58 : vector<1x32x3xf32> to vector<32x3xf32>
    %c1_20 = arith.constant 1 : index
    %c0_21 = arith.constant 0 : index
    %c0_22 = arith.constant 0 : index
    %60 = vector.load %arg3[%c1_20, %c0_21, %c0_22] : memref<2x32x1xf32, #tpu.memory_space<vmem>>, vector<1x32x1xf32>
    %61 = vector.shape_cast %60 : vector<1x32x1xf32> to vector<32x1xf32>
    %62 = vector.extract_strided_slice %59 {offsets = [0, 0], sizes = [32, 1], strides = [1, 1]} : vector<32x3xf32> to vector<32x1xf32>
    %63 = vector.extract_strided_slice %57 {offsets = [0, 0], sizes = [32, 128], strides = [1, 1]} : vector<32x130xf32> to vector<32x128xf32>
    %64 = vector.broadcast %62 : vector<32x1xf32> to vector<32x128xf32>
    %65 = arith.mulf %64, %63 : vector<32x128xf32>
    %66 = vector.broadcast %61 : vector<32x1xf32> to vector<32x128xf32>
    %67 = arith.addf %66, %65 : vector<32x128xf32>
    %68 = vector.extract_strided_slice %59 {offsets = [0, 1], sizes = [32, 1], strides = [1, 1]} : vector<32x3xf32> to vector<32x1xf32>
    %69 = vector.extract_strided_slice %57 {offsets = [0, 1], sizes = [32, 128], strides = [1, 1]} : vector<32x130xf32> to vector<32x128xf32>
    %70 = vector.broadcast %68 : vector<32x1xf32> to vector<32x128xf32>
    %71 = arith.mulf %70, %69 : vector<32x128xf32>
    %72 = arith.addf %67, %71 : vector<32x128xf32>
    %73 = vector.extract_strided_slice %59 {offsets = [0, 2], sizes = [32, 1], strides = [1, 1]} : vector<32x3xf32> to vector<32x1xf32>
    %74 = vector.extract_strided_slice %57 {offsets = [0, 2], sizes = [32, 128], strides = [1, 1]} : vector<32x130xf32> to vector<32x128xf32>
    %75 = vector.broadcast %73 : vector<32x1xf32> to vector<32x128xf32>
    %76 = arith.mulf %75, %74 : vector<32x128xf32>
    %77 = arith.addf %72, %76 : vector<32x128xf32>
    %cst_23 = arith.constant 0.000000e+00 : f32
    %78 = vector.broadcast %cst_23 : f32 to vector<32x128xf32>
    %79 = arith.maximumf %77, %78 : vector<32x128xf32>
    %c0_24 = arith.constant 0 : index
    %c0_25 = arith.constant 0 : index
    %80 = vector.load %arg4[%c0_24, %c0_25] : memref<32x128xf32, #tpu.memory_space<vmem>>, vector<32x128xf32>
    tpu.vector_store %arg4[%c0_24, %c0_25], %79 {strides = array<i32>} : memref<32x128xf32, #tpu.memory_space<vmem>>, vector<32x128xf32>,
    return
  }
  func.func @transform_0(%arg0: i32) -> (i32, i32) {
    %c0_i32 = arith.constant 0 : i32
    %c0_i32_0 = arith.constant 0 : i32
    return %arg0, %c0_i32 : i32, i32
  }
  func.func @transform_1(%arg0: i32) -> (i32, i32, i32) {
    %c0_i32 = arith.constant 0 : i32
    %c0_i32_0 = arith.constant 0 : i32
    %c0_i32_1 = arith.constant 0 : i32
    return %c0_i32, %arg0, %c0_i32_0 : i32, i32, i32
  }
  func.func @transform_2(%arg0: i32) -> (i32, i32, i32) {
    %c0_i32 = arith.constant 0 : i32
    %c0_i32_0 = arith.constant 0 : i32
    %c0_i32_1 = arith.constant 0 : i32
    return %c0_i32, %arg0, %c0_i32_0 : i32, i32, i32
  }
  func.func @transform_3(%arg0: i32) -> (i32, i32) {
    %c0_i32 = arith.constant 0 : i32
    %c0_i32_0 = arith.constant 0 : i32
    return %arg0, %c0_i32 : i32, i32
  }
}

</mosaic_0001>

<llo_original>
// kernel: tpu_custom_call.1
$region0: #{tpu_custom_call.1}
  #allocation0 [shape = 'u32[]', space=smem, size = 0x4, offset = 0x4, fixed_abs, tag = 'smem constant byte address 0x4 - core index']
  #allocation1 [shape = 'u32[144,128]{1,0:T(1,128)}', space=vmem, size = 0x12000, scoped, tag = 'internal scratch']
  %s0 = inlined_call_operand.vmem [shape: f32[32,128], index: 0, kind: input, shape index: {}]
  %s1 = inlined_call_operand.vmem [shape: f32[2,32,3], index: 1, kind: input, shape index: {}]
  %s2 = inlined_call_operand.vmem [shape: f32[2,32,1], index: 2, kind: input, shape index: {}]
  %s3 = inlined_call_operand.hbm [shape: f32[32,128], index: 3, kind: output, shape index: {}]
  %s4 = sld [smem:[#allocation0]]
  $region22: #{tpu_custom_call.1} parent=0
    _
  %s6 = ssub.s32 1, %s4
  %s7 = scalar_select 0, %s6, %s4
  $region1: #{tpu_custom_call.1} parent=0
    #allocation2 [shape = 'u8[16384]{0}', space=vmem, size = 0x4000, scoped, tag = 'output window, operand 0, single buffered']
    #allocation3 [shape = 's32[1]{0}', space=sflag, size = 0x4, scoped, tag = 'scoped memory for tpu_custom_call.1']
    %8 = vsyncpa [#allocation3], 0
    // Predicated region
    $region2: #{tpu_custom_call.1} parent=1 // pred_check
      _
    $region3: #{tpu_custom_call.1} parent=1 // pred_check_branch
      %10 = sbr.rel (0) target = $region5
    $region4: #{tpu_custom_call.1} parent=1 // pred_region
      _
    $region5: #{tpu_custom_call.1} parent=1 // pred_fallthru
      _
    // Predicated region
    $region6: #{tpu_custom_call.1} parent=1 // pred_check
      _
    $region7: #{tpu_custom_call.1} parent=1 // pred_check_branch
      %12 = sbr.rel (0) target = $region9
    $region8: #{tpu_custom_call.1} parent=1 // pred_region
      _
    $region9: #{tpu_custom_call.1} parent=1 // pred_fallthru
      _
    // Predicated region
    $region10: #{tpu_custom_call.1} parent=1 // pred_check
      _
    $region11: #{tpu_custom_call.1} parent=1 // pred_check_branch
      %14 = sbr.rel (0) target = $region13
    $region12: #{tpu_custom_call.1} parent=1 // pred_region
      _
    $region13: #{tpu_custom_call.1} parent=1 // pred_fallthru
      _
    %v15 = vld [vmem:[%s0] sm:$0xff]
    %v16 = vld [vmem:[%s0 + $0x8] sm:$0xff]
    %v17 = vld [vmem:[%s0 + $0x10] sm:$0xff]
    %v18 = vld [vmem:[%s0 + $0x18] sm:$0xff]
    %19 = vadd.xlane.f32.xlu0 %v15
    %v20 = vpop.xlane.xlu0 %19
    %21 = vadd.xlane.f32.xlu0 %v16
    %v22 = vpop.xlane.xlu0 %21
    %23 = vadd.xlane.f32.xlu0 %v17
    %v24 = vpop.xlane.xlu0 %23
    %25 = vadd.xlane.f32.xlu0 %v18
    %v26 = vpop.xlane.xlu0 %25
    %v27 = vrcp.pop 128.0
    %v28 = vmul.f32 %v20, %v27
    %v29 = vmul.f32 %v22, %v27
    %v30 = vmul.f32 %v24, %v27
    %v31 = vmul.f32 %v26, %v27
    %v32 = vsub.f32 %v15, %v28
    %v33 = vsub.f32 %v16, %v29
    %v34 = vsub.f32 %v17, %v30
    %v35 = vsub.f32 %v18, %v31
    %v36 = vmul.f32 %v32, %v32
    %v37 = vmul.f32 %v33, %v33
    %v38 = vmul.f32 %v34, %v34
    %v39 = vmul.f32 %v35, %v35
    %40 = vadd.xlane.f32.xlu0 %v36
    %v41 = vpop.xlane.xlu0 %40
    %42 = vadd.xlane.f32.xlu0 %v37
    %v43 = vpop.xlane.xlu0 %42
    %44 = vadd.xlane.f32.xlu0 %v38
    %v45 = vpop.xlane.xlu0 %44
    %46 = vadd.xlane.f32.xlu0 %v39
    %v47 = vpop.xlane.xlu0 %46
    %v48 = vmul.f32 %v41, %v27
    %v49 = vmul.f32 %v43, %v27
    %v50 = vmul.f32 %v45, %v27
    %v51 = vmul.f32 %v47, %v27
    %v52 = vadd.f32 %v48, 1e-05
    %v53 = vadd.f32 %v49, 1e-05
    %v54 = vadd.f32 %v50, 1e-05
    %v55 = vadd.f32 %v51, 1e-05
    %v56 = vrsqrt.pop %v52
    %v57 = vrsqrt.pop %v53
    %v58 = vrsqrt.pop %v54
    %v59 = vrsqrt.pop %v55
    %v60 = vmul.f32 %v32, %v56
    %v61 = vmul.f32 %v33, %v57
    %v62 = vmul.f32 %v34, %v58
    %v63 = vmul.f32 %v35, %v59
    %68 = vrot.lane.b32.xlu0 %v60, 1
    %v69 = vpop.permute.xlu0 %68
    %70 = vrot.lane.b32.xlu0 %v61, 1
    %v71 = vpop.permute.xlu0 %70
    %72 = vrot.lane.b32.xlu0 %v62, 1
    %v73 = vpop.permute.xlu0 %72
    %74 = vrot.lane.b32.xlu0 %v63, 1
    %v75 = vpop.permute.xlu0 %74
    %vm80 = vcmask 7168
    %v81 = vsel %vm80, 0.0, %v69
    %v82 = vsel %vm80, 0.0, %v71
    %v83 = vsel %vm80, 0.0, %v73
    %v84 = vsel %vm80, 0.0, %v75
    %v85 = vsel %vm80, %v69, 0.0
    %v86 = vsel %vm80, %v71, 0.0
    %v87 = vsel %vm80, %v73, 0.0
    %v88 = vsel %vm80, %v75, 0.0
    %v89 = vld [vmem:[%s1] sm:$0xff]
    %v90 = vld [vmem:[%s1 + $0x8] sm:$0xff]
    %v91 = vld [vmem:[%s1 + $0x10] sm:$0xff]
    %v92 = vld [vmem:[%s1 + $0x18] sm:$0xff]
    %v93 = vld [vmem:[%s2] sm:$0xff]
    %v94 = vld [vmem:[%s2 + $0x8] sm:$0xff]
    %v95 = vld [vmem:[%s2 + $0x10] sm:$0xff]
    %v96 = vld [vmem:[%s2 + $0x18] sm:$0xff]
    %98 = vset.pattern.permute.xlu0 0
    %99 = vperm.xlu0 %98, %v89
    %v100 = vpop.permute.xlu0 %99
    %103 = vset.pattern.permute.xlu0 0
    %104 = vperm.xlu0 %103, %v90
    %v105 = vpop.permute.xlu0 %104
    %108 = vset.pattern.permute.xlu0 0
    %109 = vperm.xlu0 %108, %v91
    %v110 = vpop.permute.xlu0 %109
    %113 = vset.pattern.permute.xlu0 0
    %114 = vperm.xlu0 %113, %v92
    %v115 = vpop.permute.xlu0 %114
    %v117 = vmul.f32 %v100, %v81
    %v118 = vmul.f32 %v105, %v82
    %v119 = vmul.f32 %v110, %v83
    %v120 = vmul.f32 %v115, %v84
    %122 = vset.pattern.permute.xlu0 0
    %123 = vperm.xlu0 %122, %v93
    %v124 = vpop.permute.xlu0 %123
    %127 = vset.pattern.permute.xlu0 0
    %128 = vperm.xlu0 %127, %v94
    %v129 = vpop.permute.xlu0 %128
    %132 = vset.pattern.permute.xlu0 0
    %133 = vperm.xlu0 %132, %v95
    %v134 = vpop.permute.xlu0 %133
    %137 = vset.pattern.permute.xlu0 0
    %138 = vperm.xlu0 %137, %v96
    %v139 = vpop.permute.xlu0 %138
    %v141 = vadd.f32 %v124, %v117
    %v142 = vadd.f32 %v129, %v118
    %v143 = vadd.f32 %v134, %v119
    %v144 = vadd.f32 %v139, %v120
    %145 = vset.pattern.permute.xlu0 1
    %146 = vperm.xlu0 %145, %v89
    %v147 = vpop.permute.xlu0 %146
    %149 = vset.pattern.permute.xlu0 1
    %150 = vperm.xlu0 %149, %v90
    %v151 = vpop.permute.xlu0 %150
    %153 = vset.pattern.permute.xlu0 1
    %154 = vperm.xlu0 %153, %v91
    %v155 = vpop.permute.xlu0 %154
    %157 = vset.pattern.permute.xlu0 1
    %158 = vperm.xlu0 %157, %v92
    %v159 = vpop.permute.xlu0 %158
    %v161 = vmul.f32 %v147, %v81
    %v162 = vmul.f32 %v147, %v85
    %v163 = vmul.f32 %v151, %v82
    %v164 = vmul.f32 %v151, %v86
    %v165 = vmul.f32 %v155, %v83
    %v166 = vmul.f32 %v155, %v87
    %v167 = vmul.f32 %v159, %v84
    %v168 = vmul.f32 %v159, %v88
    %177 = vrot.lane.b32.xlu0 %v161, 127
    %v178 = vpop.permute.xlu0 %177
    %179 = vrot.lane.b32.xlu0 %v162, 127
    %v180 = vpop.permute.xlu0 %179
    %181 = vrot.lane.b32.xlu0 %v163, 127
    %v182 = vpop.permute.xlu0 %181
    %183 = vrot.lane.b32.xlu0 %v164, 127
    %v184 = vpop.permute.xlu0 %183
    %185 = vrot.lane.b32.xlu0 %v165, 127
    %v186 = vpop.permute.xlu0 %185
    %187 = vrot.lane.b32.xlu0 %v166, 127
    %v188 = vpop.permute.xlu0 %187
    %189 = vrot.lane.b32.xlu0 %v167, 127
    %v190 = vpop.permute.xlu0 %189
    %191 = vrot.lane.b32.xlu0 %v168, 127
    %v192 = vpop.permute.xlu0 %191
    %vm193 = vcmask 1039360
    %v194 = vsel %vm193, %v178, %v180
    %v195 = vsel %vm193, %v182, %v184
    %v196 = vsel %vm193, %v186, %v188
    %v197 = vsel %vm193, %v190, %v192
    %v202 = vadd.f32 %v141, %v194
    %v203 = vadd.f32 %v142, %v195
    %v204 = vadd.f32 %v143, %v196
    %v205 = vadd.f32 %v144, %v197
    %206 = vset.pattern.permute.xlu0 2
    %207 = vperm.xlu0 %206, %v89
    %v208 = vpop.permute.xlu0 %207
    %210 = vset.pattern.permute.xlu0 2
    %211 = vperm.xlu0 %210, %v90
    %v212 = vpop.permute.xlu0 %211
    %214 = vset.pattern.permute.xlu0 2
    %215 = vperm.xlu0 %214, %v91
    %v216 = vpop.permute.xlu0 %215
    %218 = vset.pattern.permute.xlu0 2
    %219 = vperm.xlu0 %218, %v92
    %v220 = vpop.permute.xlu0 %219
    %v222 = vmul.f32 %v208, %v81
    %v223 = vmul.f32 %v208, %v85
    %v224 = vmul.f32 %v212, %v82
    %v225 = vmul.f32 %v212, %v86
    %v226 = vmul.f32 %v216, %v83
    %v227 = vmul.f32 %v216, %v87
    %v228 = vmul.f32 %v220, %v84
    %v229 = vmul.f32 %v220, %v88
    %238 = vrot.lane.b32.xlu0 %v222, 126
    %v239 = vpop.permute.xlu0 %238
    %240 = vrot.lane.b32.xlu0 %v223, 126
    %v241 = vpop.permute.xlu0 %240
    %242 = vrot.lane.b32.xlu0 %v224, 126
    %v243 = vpop.permute.xlu0 %242
    %244 = vrot.lane.b32.xlu0 %v225, 126
    %v245 = vpop.permute.xlu0 %244
    %246 = vrot.lane.b32.xlu0 %v226, 126
    %v247 = vpop.permute.xlu0 %246
    %248 = vrot.lane.b32.xlu0 %v227, 126
    %v249 = vpop.permute.xlu0 %248
    %250 = vrot.lane.b32.xlu0 %v228, 126
    %v251 = vpop.permute.xlu0 %250
    %252 = vrot.lane.b32.xlu0 %v229, 126
    %v253 = vpop.permute.xlu0 %252
    %vm254 = vcmask 1031168
    %v255 = vsel %vm254, %v239, %v241
    %v256 = vsel %vm254, %v243, %v245
    %v257 = vsel %vm254, %v247, %v249
    %v258 = vsel %vm254, %v251, %v253
    %v263 = vadd.f32 %v202, %v255
    %v264 = vadd.f32 %v203, %v256
    %v265 = vadd.f32 %v204, %v257
    %v266 = vadd.f32 %v205, %v258
    %v267 = vmax.f32 %v263, 0.0
    %v268 = vmax.f32 %v264, 0.0
    %v269 = vmax.f32 %v265, 0.0
    %v270 = vmax.f32 %v266, 0.0
    %271 = vadd.xlane.f32.xlu0 %v267
    %v272 = vpop.xlane.xlu0 %271
    %273 = vadd.xlane.f32.xlu0 %v268
    %v274 = vpop.xlane.xlu0 %273
    %275 = vadd.xlane.f32.xlu0 %v269
    %v276 = vpop.xlane.xlu0 %275
    %277 = vadd.xlane.f32.xlu0 %v270
    %v278 = vpop.xlane.xlu0 %277
    %v279 = vmul.f32 %v272, %v27
    %v280 = vmul.f32 %v274, %v27
    %v281 = vmul.f32 %v276, %v27
    %v282 = vmul.f32 %v278, %v27
    %v283 = vsub.f32 %v267, %v279
    %v284 = vsub.f32 %v268, %v280
    %v285 = vsub.f32 %v269, %v281
    %v286 = vsub.f32 %v270, %v282
    %v287 = vmul.f32 %v283, %v283
    %v288 = vmul.f32 %v284, %v284
    %v289 = vmul.f32 %v285, %v285
    %v290 = vmul.f32 %v286, %v286
    %291 = vadd.xlane.f32.xlu0 %v287
    %v292 = vpop.xlane.xlu0 %291
    %293 = vadd.xlane.f32.xlu0 %v288
    %v294 = vpop.xlane.xlu0 %293
    %295 = vadd.xlane.f32.xlu0 %v289
    %v296 = vpop.xlane.xlu0 %295
    %297 = vadd.xlane.f32.xlu0 %v290
    %v298 = vpop.xlane.xlu0 %297
    %v299 = vmul.f32 %v292, %v27
    %v300 = vmul.f32 %v294, %v27
    %v301 = vmul.f32 %v296, %v27
    %v302 = vmul.f32 %v298, %v27
    %v303 = vadd.f32 %v299, 1e-05
    %v304 = vadd.f32 %v300, 1e-05
    %v305 = vadd.f32 %v301, 1e-05
    %v306 = vadd.f32 %v302, 1e-05
    %v307 = vrsqrt.pop %v303
    %v308 = vrsqrt.pop %v304
    %v309 = vrsqrt.pop %v305
    %v310 = vrsqrt.pop %v306
    %v311 = vmul.f32 %v283, %v307
    %v312 = vmul.f32 %v284, %v308
    %v313 = vmul.f32 %v285, %v309
    %v314 = vmul.f32 %v286, %v310
    %319 = vrot.lane.b32.xlu0 %v311, 1
    %v320 = vpop.permute.xlu0 %319
    %321 = vrot.lane.b32.xlu0 %v312, 1
    %v322 = vpop.permute.xlu0 %321
    %323 = vrot.lane.b32.xlu0 %v313, 1
    %v324 = vpop.permute.xlu0 %323
    %325 = vrot.lane.b32.xlu0 %v314, 1
    %v326 = vpop.permute.xlu0 %325
    %v331 = vsel %vm80, 0.0, %v320
    %v332 = vsel %vm80, 0.0, %v322
    %v333 = vsel %vm80, 0.0, %v324
    %v334 = vsel %vm80, 0.0, %v326
    %v335 = vsel %vm80, %v320, 0.0
    %v336 = vsel %vm80, %v322, 0.0
    %v337 = vsel %vm80, %v324, 0.0
    %v338 = vsel %vm80, %v326, 0.0
    %s339 = scalar_lea.vmem %s1, 32
    %v340 = vld [vmem:[%s339] sm:$0xff]
    %v341 = vld [vmem:[%s339 + $0x8] sm:$0xff]
    %v342 = vld [vmem:[%s339 + $0x10] sm:$0xff]
    %v343 = vld [vmem:[%s339 + $0x18] sm:$0xff]
    %s344 = scalar_lea.vmem %s2, 32
    %v345 = vld [vmem:[%s344] sm:$0xff]
    %v346 = vld [vmem:[%s344 + $0x8] sm:$0xff]
    %v347 = vld [vmem:[%s344 + $0x10] sm:$0xff]
    %v348 = vld [vmem:[%s344 + $0x18] sm:$0xff]
    %350 = vset.pattern.permute.xlu0 0
    %351 = vperm.xlu0 %350, %v340
    %v352 = vpop.permute.xlu0 %351
    %355 = vset.pattern.permute.xlu0 0
    %356 = vperm.xlu0 %355, %v341
    %v357 = vpop.permute.xlu0 %356
    %360 = vset.pattern.permute.xlu0 0
    %361 = vperm.xlu0 %360, %v342
    %v362 = vpop.permute.xlu0 %361
    %365 = vset.pattern.permute.xlu0 0
    %366 = vperm.xlu0 %365, %v343
    %v367 = vpop.permute.xlu0 %366
    %v369 = vmul.f32 %v352, %v331
    %v370 = vmul.f32 %v357, %v332
    %v371 = vmul.f32 %v362, %v333
    %v372 = vmul.f32 %v367, %v334
    %374 = vset.pattern.permute.xlu0 0
    %375 = vperm.xlu0 %374, %v345
    %v376 = vpop.permute.xlu0 %375
    %379 = vset.pattern.permute.xlu0 0
    %380 = vperm.xlu0 %379, %v346
    %v381 = vpop.permute.xlu0 %380
    %384 = vset.pattern.permute.xlu0 0
    %385 = vperm.xlu0 %384, %v347
    %v386 = vpop.permute.xlu0 %385
    %389 = vset.pattern.permute.xlu0 0
    %390 = vperm.xlu0 %389, %v348
    %v391 = vpop.permute.xlu0 %390
    %v393 = vadd.f32 %v376, %v369
    %v394 = vadd.f32 %v381, %v370
    %v395 = vadd.f32 %v386, %v371
    %v396 = vadd.f32 %v391, %v372
    %397 = vset.pattern.permute.xlu0 1
    %398 = vperm.xlu0 %397, %v340
    %v399 = vpop.permute.xlu0 %398
    %401 = vset.pattern.permute.xlu0 1
    %402 = vperm.xlu0 %401, %v341
    %v403 = vpop.permute.xlu0 %402
    %405 = vset.pattern.permute.xlu0 1
    %406 = vperm.xlu0 %405, %v342
    %v407 = vpop.permute.xlu0 %406
    %409 = vset.pattern.permute.xlu0 1
    %410 = vperm.xlu0 %409, %v343
    %v411 = vpop.permute.xlu0 %410
    %v413 = vmul.f32 %v399, %v331
    %v414 = vmul.f32 %v399, %v335
    %v415 = vmul.f32 %v403, %v332
    %v416 = vmul.f32 %v403, %v336
    %v417 = vmul.f32 %v407, %v333
    %v418 = vmul.f32 %v407, %v337
    %v419 = vmul.f32 %v411, %v334
    %v420 = vmul.f32 %v411, %v338
    %429 = vrot.lane.b32.xlu0 %v413, 127
    %v430 = vpop.permute.xlu0 %429
    %431 = vrot.lane.b32.xlu0 %v414, 127
    %v432 = vpop.permute.xlu0 %431
    %433 = vrot.lane.b32.xlu0 %v415, 127
    %v434 = vpop.permute.xlu0 %433
    %435 = vrot.lane.b32.xlu0 %v416, 127
    %v436 = vpop.permute.xlu0 %435
    %437 = vrot.lane.b32.xlu0 %v417, 127
    %v438 = vpop.permute.xlu0 %437
    %439 = vrot.lane.b32.xlu0 %v418, 127
    %v440 = vpop.permute.xlu0 %439
    %441 = vrot.lane.b32.xlu0 %v419, 127
    %v442 = vpop.permute.xlu0 %441
    %443 = vrot.lane.b32.xlu0 %v420, 127
    %v444 = vpop.permute.xlu0 %443
    %v445 = vsel %vm193, %v430, %v432
    %v446 = vsel %vm193, %v434, %v436
    %v447 = vsel %vm193, %v438, %v440
    %v448 = vsel %vm193, %v442, %v444
    %v453 = vadd.f32 %v393, %v445
    %v454 = vadd.f32 %v394, %v446
    %v455 = vadd.f32 %v395, %v447
    %v456 = vadd.f32 %v396, %v448
    %457 = vset.pattern.permute.xlu0 2
    %458 = vperm.xlu0 %457, %v340
    %v459 = vpop.permute.xlu0 %458
    %461 = vset.pattern.permute.xlu0 2
    %462 = vperm.xlu0 %461, %v341
    %v463 = vpop.permute.xlu0 %462
    %465 = vset.pattern.permute.xlu0 2
    %466 = vperm.xlu0 %465, %v342
    %v467 = vpop.permute.xlu0 %466
    %469 = vset.pattern.permute.xlu0 2
    %470 = vperm.xlu0 %469, %v343
    %v471 = vpop.permute.xlu0 %470
    %v473 = vmul.f32 %v459, %v331
    %v474 = vmul.f32 %v459, %v335
    %v475 = vmul.f32 %v463, %v332
    %v476 = vmul.f32 %v463, %v336
    %v477 = vmul.f32 %v467, %v333
    %v478 = vmul.f32 %v467, %v337
    %v479 = vmul.f32 %v471, %v334
    %v480 = vmul.f32 %v471, %v338
    %489 = vrot.lane.b32.xlu0 %v473, 126
    %v490 = vpop.permute.xlu0 %489
    %491 = vrot.lane.b32.xlu0 %v474, 126
    %v492 = vpop.permute.xlu0 %491
    %493 = vrot.lane.b32.xlu0 %v475, 126
    %v494 = vpop.permute.xlu0 %493
    %495 = vrot.lane.b32.xlu0 %v476, 126
    %v496 = vpop.permute.xlu0 %495
    %497 = vrot.lane.b32.xlu0 %v477, 126
    %v498 = vpop.permute.xlu0 %497
    %499 = vrot.lane.b32.xlu0 %v478, 126
    %v500 = vpop.permute.xlu0 %499
    %501 = vrot.lane.b32.xlu0 %v479, 126
    %v502 = vpop.permute.xlu0 %501
    %503 = vrot.lane.b32.xlu0 %v480, 126
    %v504 = vpop.permute.xlu0 %503
    %v505 = vsel %vm254, %v490, %v492
    %v506 = vsel %vm254, %v494, %v496
    %v507 = vsel %vm254, %v498, %v500
    %v508 = vsel %vm254, %v502, %v504
    %v513 = vadd.f32 %v453, %v505
    %v514 = vadd.f32 %v454, %v506
    %v515 = vadd.f32 %v455, %v507
    %v516 = vadd.f32 %v456, %v508
    %v517 = vmax.f32 %v513, 0.0
    %v518 = vmax.f32 %v514, 0.0
    %v519 = vmax.f32 %v515, 0.0
    %v520 = vmax.f32 %v516, 0.0
    %521 = vst [vmem:[#allocation2] sm:$0xff] %v517
    %522 = vst [vmem:[#allocation2 + $0x8] sm:$0xff] %v518
    %523 = vst [vmem:[#allocation2 + $0x10] sm:$0xff] %v519
    %524 = vst [vmem:[#allocation2 + $0x18] sm:$0xff] %v520
    // Predicated region
    $region14: #{tpu_custom_call.1} parent=1 // pred_check
      _
    $region15: #{tpu_custom_call.1} parent=1 // pred_check_branch
      %526 = sbr.rel (0) target = $region17
    $region16: #{tpu_custom_call.1} parent=1 // pred_region
      %s528 = ssub.s32 512, 512
      %529 = vsyncadd [#allocation3], %s528
      %s530 = sshll.u32 [#allocation2], 4
      %s531 = int_to_ptr.vmem [resolvable:$true] %s530
      %536 = dma.vmem_to_hbm [thread:$0]  %s531, 512, %s3, [#allocation3], 128, 128, 8
    $region17: #{tpu_custom_call.1} parent=1 // pred_fallthru
      _
    // Predicated region
    $region18: #{tpu_custom_call.1} parent=1 // pred_check
      _
    $region19: #{tpu_custom_call.1} parent=1 // pred_check_branch
      %538 = sbr.rel (0) target = $region21
    $region20: #{tpu_custom_call.1} parent=1 // pred_region
      %539 = dma.done [#allocation3], 512
    $region21: #{tpu_custom_call.1} parent=1 // pred_fallthru
      _
    %540 = vsyncpa [#allocation3], 1

</llo_original>
